<compile_context>
chip_gen: v6e
topology: v6e:2x2x1
jax: 0.10.0
libtpu: 0.0.40
codegen_flags: <defaults>
</compile_context>

<pallas_src>
import jax
import jax.numpy as jnp
from jax import lax
from jax.experimental import pallas as pl
from jax.experimental.pallas import tpu as pltpu

HIDDEN = 128
BLOCK_B = 2048  # max batch rows per grid step (multiple of 128)


def _round_up(x, m):
    return (x + m - 1) // m * m


def _choose_tb(b_pad, block_b):
    """Largest multiple-of-128 tile that divides b_pad and is <= block_b,
    preferring >= 2 grid steps (so v7x's two TensorCores both get work)."""
    n = b_pad // 128
    cap = max(1, block_b // 128)
    best = 1
    for d in range(1, n + 1):
        if n % d != 0 or d > cap:
            continue
        if n >= 2 and d == n:  # keep at least 2 grid steps when possible
            continue
        best = d
    return best * 128


def _qnet_kernel(x_ref, w1_ref, b1_ref, w2_ref, b2_ref, out_ref):
    # x_ref:  (TB, d_in)   concatenated [state, action] tile (streamed)
    # w1_ref: (d_in, 128)  layer-1 weight (VMEM-resident, constant index_map)
    # b1_ref: (1, 128)
    # w2_ref: (1, 128)     layer-2 weight as a row (resident)
    # b2_ref: (1, 1)       scalar in SMEM
    # out_ref:(1, TB)      lane-dense q row for this tile
    h = jnp.dot(x_ref[...], w1_ref[...], preferred_element_type=jnp.float32)
    h = jnp.maximum(h + b1_ref[...], 0.0)                       # ReLU, (TB, 128) f32
    # Layer 2 (out_features == 1): single MXU contraction producing the
    # lane-dense (1, TB) output row directly (no XLU lane-reduce / transpose).
    q_row = lax.dot_general(
        w2_ref[...], h,
        dimension_numbers=(((1,), (1,)), ((), ())),
        preferred_element_type=jnp.float32)                     # (1, TB)
    out_ref[...] = (q_row + b2_ref[0, 0]).astype(out_ref.dtype)


def qnetwork_forward(state, action, params, block_b=BLOCK_B,
                     matmul_dtype=jnp.float32):
    """Pallas forward pass of QNetwork.

    state:  (B, state_dim)  float32
    action: (B, action_dim) float32
    params: dict with w1 (state_dim+action_dim, 128), b1 (128,), w2 (128, 1), b2 (1,)
    matmul_dtype: jnp.bfloat16 is recommended on v5e (MXU is bf16-native);
                  accumulation stays f32 either way.
    returns (B, 1) float32
    """
    B, sdim = state.shape
    _, adim = action.shape
    d_in = sdim + adim

    # Single contiguous input stream; concat cost is only B * d_in * 4 bytes
    # in HBM and lets the kernel do one fused layer-1 matmul.
    x = jnp.concatenate([state, action], axis=-1)               # (B, d_in)
    w1 = params["w1"]
    if matmul_dtype != jnp.float32:
        x = x.astype(matmul_dtype)
        w1 = w1.astype(matmul_dtype)
    b1 = params["b1"].reshape(1, HIDDEN).astype(jnp.float32)    # (1, 128)
    w2_row = params["w2"].reshape(1, HIDDEN).astype(jnp.float32)  # (1, 128)
    b2 = params["b2"].reshape(1, 1).astype(jnp.float32)         # (1, 1) -> SMEM

    # Pad batch only to a multiple of 128; tile size divides the padded batch
    # so no grid step computes an entirely-padded tile.
    b_pad = _round_up(max(B, 1), 128)
    if b_pad != B:
        x = jnp.pad(x, ((0, b_pad - B), (0, 0)))
    tb = _choose_tb(b_pad, block_b)
    grid = (b_pad // tb,)

    flops = 2 * b_pad * d_in * HIDDEN + 2 * b_pad * HIDDEN + 2 * b_pad * HIDDEN
    bytes_accessed = (x.dtype.itemsize * b_pad * d_in
                      + w1.dtype.itemsize * d_in * HIDDEN
                      + 4 * (2 * HIDDEN + 1)
                      + 4 * b_pad)

    # Weights/biases use constant index_maps (block revisited every step), so
    # Pallas keeps them resident in VMEM; only x and the output are streamed.
    q_row = pl.pallas_call(
        _qnet_kernel,
        out_shape=jax.ShapeDtypeStruct((1, b_pad), jnp.float32),
        grid=grid,
        in_specs=[
            pl.BlockSpec((tb, d_in), lambda i: (i, 0)),          # x tile (streamed)
            pl.BlockSpec((d_in, HIDDEN), lambda i: (0, 0)),      # W1      (resident)
            pl.BlockSpec((1, HIDDEN), lambda i: (0, 0)),         # b1      (resident)
            pl.BlockSpec((1, HIDDEN), lambda i: (0, 0)),         # w2 row  (resident)
            pl.BlockSpec(memory_space=pltpu.MemorySpace.SMEM),   # b2 scalar
        ],
        out_specs=pl.BlockSpec((1, tb), lambda i: (0, i)),       # lane-dense q row
        compiler_params=pltpu.CompilerParams(
            dimension_semantics=("parallel",)),
        cost_estimate=pl.CostEstimate(
            flops=flops, transcendentals=0, bytes_accessed=bytes_accessed),
    )(x, w1, b1, w2_row, b2)

    return q_row[0, :B].reshape(B, 1)


def init_params(key, state_dim, action_dim):
    """Deterministic init matching nn.Linear default (U[-1/sqrt(fan_in), +])."""
    d_in = state_dim + action_dim
    k1, k2, k3, k4 = jax.random.split(key, 4)
    lim1 = 1.0 / jnp.sqrt(d_in)
    lim2 = 1.0 / jnp.sqrt(HIDDEN)
    return {
        "w1": jax.random.uniform(k1, (d_in, HIDDEN), jnp.float32, -lim1, lim1),
        "b1": jax.random.uniform(k2, (HIDDEN,), jnp.float32, -lim1, lim1),
        "w2": jax.random.uniform(k3, (HIDDEN, 1), jnp.float32, -lim2, lim2),
        "b2": jax.random.uniform(k4, (1,), jnp.float32, -lim2, lim2),
    }


def qnetwork_ref(state, action, params):
    x = jnp.concatenate([state, action], axis=-1)
    h = jnp.maximum(x @ params["w1"] + params["b1"], 0.0)
    return h @ params["w2"] + params["b2"]


if __name__ == "__main__":
    B, state_dim, action_dim = 2, 8, 4
    key = jax.random.PRNGKey(0)
    ks, ka, kp = jax.random.split(key, 3)

    state = jax.random.normal(ks, (B, state_dim), jnp.float32)
    action = jax.random.normal(ka, (B, action_dim), jnp.float32)
    params = init_params(kp, state_dim, action_dim)

    q = qnetwork_forward(state, action, params)
    q = jax.block_until_ready(q)

    q_ref = qnetwork_ref(state, action, params)
    assert q.shape == (B, 1), q.shape
    assert jnp.allclose(q, q_ref, atol=1e-4, rtol=1e-4), (q, q_ref)

    print("KERNEL_OK")
</pallas_src>

<mosaic_0001>
module attributes {stable_mosaic.version = 11 : i64} {
  func.func @_qnet_kernel(%arg0: i32, %arg1: memref<128x12xf32, #tpu.memory_space<vmem>>, %arg2: memref<12x128xf32, #tpu.memory_space<vmem>>, %arg3: memref<1x128xf32, #tpu.memory_space<vmem>>, %arg4: memref<1x128xf32, #tpu.memory_space<vmem>>, %arg5: memref<1x1xf32, #tpu.memory_space<smem>>, %arg6: memref<1x128xf32, #tpu.memory_space<vmem>>) attributes {dimension_semantics = [#tpu.dimension_semantics<parallel>], iteration_bounds = array<i64: 1>, scalar_prefetch = 0 : i64, scratch_operands = 0 : i64, tpu.core_type = #tpu.core_type<tc>, window_params = [{transform_indices = @transform_0, window_bounds = array<i64: 128, 12>}, {pipeline_mode = #tpu.pipeline_mode<synchronous>, transform_indices = @transform_1, window_bounds = array<i64: 12, 128>}, {pipeline_mode = #tpu.pipeline_mode<synchronous>, transform_indices = @transform_2, window_bounds = array<i64: 1, 128>}, {pipeline_mode = #tpu.pipeline_mode<synchronous>, transform_indices = @transform_3, window_bounds = array<i64: 1, 128>}, {transform_indices = @transform_4, window_bounds = array<i64: 1, 1>}, {transform_indices = @transform_5, window_bounds = array<i64: 1, 128>}]} {
    %c0 = arith.constant 0 : index
    %c0_0 = arith.constant 0 : index
    %0 = vector.load %arg1[%c0, %c0_0] : memref<128x12xf32, #tpu.memory_space<vmem>>, vector<128x12xf32>
    %c0_1 = arith.constant 0 : index
    %c0_2 = arith.constant 0 : index
    %1 = vector.load %arg2[%c0_1, %c0_2] : memref<12x128xf32, #tpu.memory_space<vmem>>, vector<12x128xf32>
    %cst = arith.constant dense<0.000000e+00> : vector<128x128xf32>
    %2 = tpu.matmul %0, %1, %cst {dimension_numbers = #tpu.dot_dimension_numbers<[1], [0], [0], [1], [0, 0, 1, 1], [], []>} : vector<128x12xf32>, vector<12x128xf32>, vector<128x128xf32> -> vector<128x128xf32>
    %c0_3 = arith.constant 0 : index
    %c0_4 = arith.constant 0 : index
    %3 = vector.load %arg3[%c0_3, %c0_4] : memref<1x128xf32, #tpu.memory_space<vmem>>, vector<1x128xf32>
    %4 = vector.broadcast %3 : vector<1x128xf32> to vector<128x128xf32>
    %5 = arith.addf %2, %4 : vector<128x128xf32>
    %cst_5 = arith.constant 0.000000e+00 : f32
    %6 = vector.broadcast %cst_5 : f32 to vector<128x128xf32>
    %7 = arith.maximumf %5, %6 : vector<128x128xf32>
    %c0_6 = arith.constant 0 : index
    %c0_7 = arith.constant 0 : index
    %8 = vector.load %arg4[%c0_6, %c0_7] : memref<1x128xf32, #tpu.memory_space<vmem>>, vector<1x128xf32>
    %cst_8 = arith.constant dense<0.000000e+00> : vector<1x128xf32>
    %9 = tpu.matmul %8, %7, %cst_8 {dimension_numbers = #tpu.dot_dimension_numbers<[1], [1], [0], [0], [0, 0, 1, 0], [], []>} : vector<1x128xf32>, vector<128x128xf32>, vector<1x128xf32> -> vector<1x128xf32>
    %c0_9 = arith.constant 0 : index
    %c0_10 = arith.constant 0 : index
    %10 = memref.load %arg5[%c0_9, %c0_10] : memref<1x1xf32, #tpu.memory_space<smem>>
    %11 = vector.broadcast %10 : f32 to vector<1x128xf32>
    %12 = arith.addf %9, %11 : vector<1x128xf32>
    %c0_11 = arith.constant 0 : index
    %c0_12 = arith.constant 0 : index
    %13 = vector.load %arg6[%c0_11, %c0_12] : memref<1x128xf32, #tpu.memory_space<vmem>>, vector<1x128xf32>
    tpu.vector_store %arg6[%c0_11, %c0_12], %12 {strides = array<i32>} : memref<1x128xf32, #tpu.memory_space<vmem>>, vector<1x128xf32>,
    return
  }
  func.func @transform_0(%arg0: i32) -> (i32, i32) {
    %c0_i32 = arith.constant 0 : i32
    %c0_i32_0 = arith.constant 0 : i32
    return %arg0, %c0_i32 : i32, i32
  }
  func.func @transform_1(%arg0: i32) -> (i32, i32) {
    %c0_i32 = arith.constant 0 : i32
    %c0_i32_0 = arith.constant 0 : i32
    %c0_i32_1 = arith.constant 0 : i32
    return %c0_i32, %c0_i32_0 : i32, i32
  }
  func.func @transform_2(%arg0: i32) -> (i32, i32) {
    %c0_i32 = arith.constant 0 : i32
    %c0_i32_0 = arith.constant 0 : i32
    %c0_i32_1 = arith.constant 0 : i32
    return %c0_i32, %c0_i32_0 : i32, i32
  }
  func.func @transform_3(%arg0: i32) -> (i32, i32) {
    %c0_i32 = arith.constant 0 : i32
    %c0_i32_0 = arith.constant 0 : i32
    %c0_i32_1 = arith.constant 0 : i32
    return %c0_i32, %c0_i32_0 : i32, i32
  }
  func.func @transform_4(%arg0: i32) -> (i32, i32) {
    %c0_i32 = arith.constant 0 : i32
    %c0_i32_0 = arith.constant 0 : i32
    %c0_i32_1 = arith.constant 0 : i32
    return %c0_i32, %c0_i32_0 : i32, i32
  }
  func.func @transform_5(%arg0: i32) -> (i32, i32) {
    %c0_i32 = arith.constant 0 : i32
    %c0_i32_0 = arith.constant 0 : i32
    return %c0_i32, %arg0 : i32, i32
  }
}

</mosaic_0001>

<llo_original>
// kernel: tpu_custom_call.1
$region0: #{tpu_custom_call.1}
  #allocation0 [shape = 'u32[]', space=smem, size = 0x4, offset = 0x4, fixed_abs, tag = 'smem constant byte address 0x4 - core index']
  #allocation1 [shape = 'u32[144,128]{1,0:T(1,128)}', space=vmem, size = 0x12000, scoped, tag = 'internal scratch']
  #allocation2 [shape = 'f32[1,1]{1,0:T(1,128)S(6)}', space=smem, size = 0x200, scoped, tag = 'scoped memory for tpu_custom_call.1']
  %s0 = inlined_call_operand.vmem [shape: f32[128,12], index: 0, kind: input, shape index: {}]
  %s1 = inlined_call_operand.vmem [shape: f32[12,128], index: 1, kind: input, shape index: {}]
  %s2 = inlined_call_operand.vmem [shape: f32[1,128], index: 2, kind: input, shape index: {}]
  %s3 = inlined_call_operand.vmem [shape: f32[1,128], index: 3, kind: input, shape index: {}]
  %s4 = inlined_call_operand.<no memory space> [shape: f32[1,1], index: 4, kind: input, shape index: {}]
  %s5 = inlined_call_operand.hbm [shape: f32[1,128], index: 5, kind: output, shape index: {}]
  %s6 = sld [smem:[#allocation0]]
  $region30: #{tpu_custom_call.1} parent=0
    _
  %s8 = ssub.s32 1, %s6
  %s9 = scalar_select 0, %s8, %s6
  %10 = sst [smem:[#allocation2]] %s4
  $region1: #{tpu_custom_call.1} parent=0
    #allocation3 [shape = 'u8[512]{0}', space=vmem, size = 0x400, scoped, tag = 'output window, operand 0, single buffered']
    #allocation4 [shape = 's32[1]{0}', space=sflag, size = 0x4, scoped, tag = 'scoped memory for tpu_custom_call.1']
    %11 = vsyncpa [#allocation4], 0
    // Predicated region
    $region2: #{tpu_custom_call.1} parent=1 // pred_check
      _
    $region3: #{tpu_custom_call.1} parent=1 // pred_check_branch
      %13 = sbr.rel (0) target = $region5
    $region4: #{tpu_custom_call.1} parent=1 // pred_region
      _
    $region5: #{tpu_custom_call.1} parent=1 // pred_fallthru
      _
    // Predicated region
    $region6: #{tpu_custom_call.1} parent=1 // pred_check
      _
    $region7: #{tpu_custom_call.1} parent=1 // pred_check_branch
      %15 = sbr.rel (0) target = $region9
    $region8: #{tpu_custom_call.1} parent=1 // pred_region
      _
    $region9: #{tpu_custom_call.1} parent=1 // pred_fallthru
      _
    // Predicated region
    $region10: #{tpu_custom_call.1} parent=1 // pred_check
      _
    $region11: #{tpu_custom_call.1} parent=1 // pred_check_branch
      %17 = sbr.rel (0) target = $region13
    $region12: #{tpu_custom_call.1} parent=1 // pred_region
      _
    $region13: #{tpu_custom_call.1} parent=1 // pred_fallthru
      _
    // Predicated region
    $region14: #{tpu_custom_call.1} parent=1 // pred_check
      _
    $region15: #{tpu_custom_call.1} parent=1 // pred_check_branch
      %19 = sbr.rel (0) target = $region17
    $region16: #{tpu_custom_call.1} parent=1 // pred_region
      _
    $region17: #{tpu_custom_call.1} parent=1 // pred_fallthru
      _
    // Predicated region
    $region18: #{tpu_custom_call.1} parent=1 // pred_check
      _
    $region19: #{tpu_custom_call.1} parent=1 // pred_check_branch
      %21 = sbr.rel (0) target = $region21
    $region20: #{tpu_custom_call.1} parent=1 // pred_region
      _
    $region21: #{tpu_custom_call.1} parent=1 // pred_fallthru
      _
    %v22 = vld [vmem:[%s0] sm:$0xff]
    %v23 = vld [vmem:[%s0 + $0x8] sm:$0xff]
    %v24 = vld [vmem:[%s0 + $0x10] sm:$0xff]
    %v25 = vld [vmem:[%s0 + $0x18] sm:$0xff]
    %v26 = vld [vmem:[%s0 + $0x20] sm:$0xff]
    %v27 = vld [vmem:[%s0 + $0x28] sm:$0xff]
    %v28 = vld [vmem:[%s0 + $0x30] sm:$0xff]
    %v29 = vld [vmem:[%s0 + $0x38] sm:$0xff]
    %v30 = vld [vmem:[%s0 + $0x40] sm:$0xff]
    %v31 = vld [vmem:[%s0 + $0x48] sm:$0xff]
    %v32 = vld [vmem:[%s0 + $0x50] sm:$0xff]
    %v33 = vld [vmem:[%s0 + $0x58] sm:$0xff]
    %v34 = vld [vmem:[%s0 + $0x60] sm:$0xff]
    %v35 = vld [vmem:[%s0 + $0x68] sm:$0xff]
    %v36 = vld [vmem:[%s0 + $0x70] sm:$0xff]
    %v37 = vld [vmem:[%s0 + $0x78] sm:$0xff]
    %v38 = vld [vmem:[%s1] sm:$0xff]
    %v39 = vld [vmem:[%s1 + $0x8] sm:$0xf]
    %v40 = vld [vmem:[%s2] sm:$0x1]
    %v42 = vlaneseq
    %v43 = vshrl.u32 %v42, 7
    %v44 = vsub.s32 0, %v43
    %v45 = vrot.slane %v40, %v44
    %vm47 = vcmask 97280
    %v49 = vsel %vm47, %v22, 0
    %v52 = vsel %vm47, %v23, 0
    %v55 = vsel %vm47, %v24, 0
    %v58 = vsel %vm47, %v25, 0
    %v61 = vsel %vm47, %v26, 0
    %v64 = vsel %vm47, %v27, 0
    %v67 = vsel %vm47, %v28, 0
    %v70 = vsel %vm47, %v29, 0
    %v73 = vsel %vm47, %v30, 0
    %v76 = vsel %vm47, %v31, 0
    %v79 = vsel %vm47, %v32, 0
    %v82 = vsel %vm47, %v33, 0
    %v85 = vsel %vm47, %v34, 0
    %v88 = vsel %vm47, %v35, 0
    %v91 = vsel %vm47, %v36, 0
    %v94 = vsel %vm47, %v37, 0
    %vm96 = vcmask 1043456
    %v98 = vsel %vm96, %v39, 0
    %100 = vmatprep.subr.mxu0 0.0
    %101 = vmatpush1.msra.mxu0 0.0
    %102 = vmatprep.subr.mxu0 0.0
    %103 = vmatpush1.msra.mxu0 0.0
    %104 = vmatprep.subr.mxu0 0.0
    %105 = vmatpush1.msra.mxu0 0.0
    %106 = vmatprep.subr.mxu0 0.0
    %107 = vmatpush1.msra.mxu0 0.0
    %108 = vmatprep.subr.mxu0 0.0
    %109 = vmatpush1.msra.mxu0 0.0
    %110 = vmatprep.subr.mxu0 0.0
    %111 = vmatpush1.msra.mxu0 0.0
    %112 = vmatprep.subr.mxu0 0.0
    %113 = vmatpush1.msra.mxu0 0.0
    %114 = vmatprep.subr.mxu0 0.0
    %115 = vmatpush1.msra.mxu0 0.0
    %116 = vmatprep.subr.mxu0 0.0
    %117 = vmatpush1.msra.mxu0 0.0
    %118 = vmatprep.subr.mxu0 0.0
    %119 = vmatpush1.msra.mxu0 0.0
    %120 = vmatprep.subr.mxu0 0.0
    %121 = vmatpush1.msra.mxu0 0.0
    %122 = vmatprep.subr.mxu0 0.0
    %123 = vmatpush1.msra.mxu0 0.0
    %124 = vmatprep.subr.mxu0 0.0
    %125 = vmatpush1.msra.mxu0 0.0
    %126 = vmatprep.subr.mxu0 0.0
    %127 = vmatpush1.msra.mxu0 0.0
    %128 = vmatprep.subr.mxu0 0.0
    %129 = vmatpush1.msra.mxu0 %v98
    %130 = vmatprep.subr.mxu0 0.0
    %131 = vmatpush1.msra.mxu0 %v38
    %132 = vmatprep.subr.mxu0 0.0
    %133 = vmatpush2.msra.mxu0 0.0
    %134 = vmatprep.subr.mxu0 0.0
    %135 = vmatpush2.msra.mxu0 0.0
    %136 = vmatprep.subr.mxu0 0.0
    %137 = vmatpush2.msra.mxu0 0.0
    %138 = vmatprep.subr.mxu0 0.0
    %139 = vmatpush2.msra.mxu0 0.0
    %140 = vmatprep.subr.mxu0 0.0
    %141 = vmatpush2.msra.mxu0 0.0
    %142 = vmatprep.subr.mxu0 0.0
    %143 = vmatpush2.msra.mxu0 0.0
    %144 = vmatprep.subr.mxu0 0.0
    %145 = vmatpush2.msra.mxu0 0.0
    %146 = vmatprep.subr.mxu0 0.0
    %147 = vmatpush2.msra.mxu0 0.0
    %148 = vmatprep.subr.mxu0 0.0
    %149 = vmatpush2.msra.mxu0 0.0
    %150 = vmatprep.subr.mxu0 0.0
    %151 = vmatpush2.msra.mxu0 0.0
    %152 = vmatprep.subr.mxu0 0.0
    %153 = vmatpush2.msra.mxu0 0.0
    %154 = vmatprep.subr.mxu0 0.0
    %155 = vmatpush2.msra.mxu0 0.0
    %156 = vmatprep.subr.mxu0 0.0
    %157 = vmatpush2.msra.mxu0 0.0
    %158 = vmatprep.subr.mxu0 0.0
    %159 = vmatpush2.msra.mxu0 0.0
    %160 = vmatprep.subr.mxu0 0.0
    %161 = vmatpush2.msra.mxu0 0.0
    %162 = vmatprep.subr.mxu0 0.0
    %163 = vmatpush2.msra.mxu0 0.0
    %164 = vmatprep.mubr.f32.mxu0 0.0
    %165 = vmatmul.mubr.f32.gmra.mxu0 %v49
    %v166 = vpop.f32.mrf.mxu0
    %v167 = vadd.f32 %v45, %v166
    %v168 = vpop.f32.mrf.mxu0
    %169 = vmatprep.mubr.f32.mxu0 0.0
    %170 = vmatmul.mubr.f32.gmra.mxu0 %v52
    %v171 = vpop.f32.mrf.mxu0
    %v172 = vadd.f32 %v45, %v171
    %v173 = vpop.f32.mrf.mxu0
    %174 = vmatprep.mubr.f32.mxu0 0.0
    %175 = vmatmul.mubr.f32.gmra.mxu0 %v55
    %v176 = vpop.f32.mrf.mxu0
    %v177 = vadd.f32 %v45, %v176
    %v178 = vpop.f32.mrf.mxu0
    %179 = vmatprep.mubr.f32.mxu0 0.0
    %180 = vmatmul.mubr.f32.gmra.mxu0 %v58
    %v181 = vpop.f32.mrf.mxu0
    %v182 = vadd.f32 %v45, %v181
    %v183 = vpop.f32.mrf.mxu0
    %184 = vmatprep.mubr.f32.mxu0 0.0
    %185 = vmatmul.mubr.f32.gmra.mxu0 %v61
    %v186 = vpop.f32.mrf.mxu0
    %v187 = vadd.f32 %v45, %v186
    %v188 = vpop.f32.mrf.mxu0
    %189 = vmatprep.mubr.f32.mxu0 0.0
    %190 = vmatmul.mubr.f32.gmra.mxu0 %v64
    %v191 = vpop.f32.mrf.mxu0
    %v192 = vadd.f32 %v45, %v191
    %v193 = vpop.f32.mrf.mxu0
    %194 = vmatprep.mubr.f32.mxu0 0.0
    %195 = vmatmul.mubr.f32.gmra.mxu0 %v67
    %v196 = vpop.f32.mrf.mxu0
    %v197 = vadd.f32 %v45, %v196
    %v198 = vpop.f32.mrf.mxu0
    %199 = vmatprep.mubr.f32.mxu0 0.0
    %200 = vmatmul.mubr.f32.gmra.mxu0 %v70
    %v201 = vpop.f32.mrf.mxu0
    %v202 = vadd.f32 %v45, %v201
    %v203 = vpop.f32.mrf.mxu0
    %204 = vmatprep.mubr.f32.mxu0 0.0
    %205 = vmatmul.mubr.f32.gmra.mxu0 %v73
    %v206 = vpop.f32.mrf.mxu0
    %v207 = vadd.f32 %v45, %v206
    %v208 = vpop.f32.mrf.mxu0
    %209 = vmatprep.mubr.f32.mxu0 0.0
    %210 = vmatmul.mubr.f32.gmra.mxu0 %v76
    %v211 = vpop.f32.mrf.mxu0
    %v212 = vadd.f32 %v45, %v211
    %v213 = vpop.f32.mrf.mxu0
    %214 = vmatprep.mubr.f32.mxu0 0.0
    %215 = vmatmul.mubr.f32.gmra.mxu0 %v79
    %v216 = vpop.f32.mrf.mxu0
    %v217 = vadd.f32 %v45, %v216
    %v218 = vpop.f32.mrf.mxu0
    %219 = vmatprep.mubr.f32.mxu0 0.0
    %220 = vmatmul.mubr.f32.gmra.mxu0 %v82
    %v221 = vpop.f32.mrf.mxu0
    %v222 = vadd.f32 %v45, %v221
    %v223 = vpop.f32.mrf.mxu0
    %224 = vmatprep.mubr.f32.mxu0 0.0
    %225 = vmatmul.mubr.f32.gmra.mxu0 %v85
    %v226 = vpop.f32.mrf.mxu0
    %v227 = vadd.f32 %v45, %v226
    %v228 = vpop.f32.mrf.mxu0
    %229 = vmatprep.mubr.f32.mxu0 0.0
    %230 = vmatmul.mubr.f32.gmra.mxu0 %v88
    %v231 = vpop.f32.mrf.mxu0
    %v232 = vadd.f32 %v45, %v231
    %v233 = vpop.f32.mrf.mxu0
    %234 = vmatprep.mubr.f32.mxu0 0.0
    %235 = vmatmul.mubr.f32.gmra.mxu0 %v91
    %v236 = vpop.f32.mrf.mxu0
    %v237 = vadd.f32 %v45, %v236
    %v238 = vpop.f32.mrf.mxu0
    %239 = vmatprep.mubr.f32.mxu0 0.0
    %240 = vmatmul.mubr.f32.gmra.mxu0 %v94
    %v241 = vpop.f32.mrf.mxu0
    %v242 = vadd.f32 %v45, %v241
    %v243 = vpop.f32.mrf.mxu0
    %244 = vdwg.mxu0
    %v245 = vmax.f32 %v167, 0.0
    %v246 = vmax.f32 %v172, 0.0
    %v247 = vmax.f32 %v177, 0.0
    %v248 = vmax.f32 %v182, 0.0
    %v249 = vmax.f32 %v187, 0.0
    %v250 = vmax.f32 %v192, 0.0
    %v251 = vmax.f32 %v197, 0.0
    %v252 = vmax.f32 %v202, 0.0
    %v253 = vmax.f32 %v207, 0.0
    %v254 = vmax.f32 %v212, 0.0
    %v255 = vmax.f32 %v217, 0.0
    %v256 = vmax.f32 %v222, 0.0
    %v257 = vmax.f32 %v227, 0.0
    %v258 = vmax.f32 %v232, 0.0
    %v259 = vmax.f32 %v237, 0.0
    %v260 = vmax.f32 %v242, 0.0
    %v261 = vld [vmem:[%s3] sm:$0x1]
    %s262 = sld [smem:[#allocation2]]
    %v263 = vstv %s262
    %264 = vmatprep.subr.mxu0 0.0
    %265 = vmatpush1.xpose.msra.mxu0 %v260
    %266 = vmatprep.subr.mxu0 0.0
    %267 = vmatpush1.xpose.msra.mxu0 %v259
    %268 = vmatprep.subr.mxu0 0.0
    %269 = vmatpush1.xpose.msra.mxu0 %v258
    %270 = vmatprep.subr.mxu0 0.0
    %271 = vmatpush1.xpose.msra.mxu0 %v257
    %272 = vmatprep.subr.mxu0 0.0
    %273 = vmatpush1.xpose.msra.mxu0 %v256
    %274 = vmatprep.subr.mxu0 0.0
    %275 = vmatpush1.xpose.msra.mxu0 %v255
    %276 = vmatprep.subr.mxu0 0.0
    %277 = vmatpush1.xpose.msra.mxu0 %v254
    %278 = vmatprep.subr.mxu0 0.0
    %279 = vmatpush1.xpose.msra.mxu0 %v253
    %280 = vmatprep.subr.mxu0 0.0
    %281 = vmatpush1.xpose.msra.mxu0 %v252
    %282 = vmatprep.subr.mxu0 0.0
    %283 = vmatpush1.xpose.msra.mxu0 %v251
    %284 = vmatprep.subr.mxu0 0.0
    %285 = vmatpush1.xpose.msra.mxu0 %v250
    %286 = vmatprep.subr.mxu0 0.0
    %287 = vmatpush1.xpose.msra.mxu0 %v249
    %288 = vmatprep.subr.mxu0 0.0
    %289 = vmatpush1.xpose.msra.mxu0 %v248
    %290 = vmatprep.subr.mxu0 0.0
    %291 = vmatpush1.xpose.msra.mxu0 %v247
    %292 = vmatprep.subr.mxu0 0.0
    %293 = vmatpush1.xpose.msra.mxu0 %v246
    %294 = vmatprep.subr.mxu0 0.0
    %295 = vmatpush1.xpose.msra.mxu0 %v245
    %296 = vmatprep.subr.mxu0 0.0
    %297 = vmatpush2.xpose.msra.mxu0 0.0
    %298 = vmatprep.subr.mxu0 0.0
    %299 = vmatpush2.xpose.msra.mxu0 0.0
    %300 = vmatprep.subr.mxu0 0.0
    %301 = vmatpush2.xpose.msra.mxu0 0.0
    %302 = vmatprep.subr.mxu0 0.0
    %303 = vmatpush2.xpose.msra.mxu0 0.0
    %304 = vmatprep.subr.mxu0 0.0
    %305 = vmatpush2.xpose.msra.mxu0 0.0
    %306 = vmatprep.subr.mxu0 0.0
    %307 = vmatpush2.xpose.msra.mxu0 0.0
    %308 = vmatprep.subr.mxu0 0.0
    %309 = vmatpush2.xpose.msra.mxu0 0.0
    %310 = vmatprep.subr.mxu0 0.0
    %311 = vmatpush2.xpose.msra.mxu0 0.0
    %312 = vmatprep.subr.mxu0 0.0
    %313 = vmatpush2.xpose.msra.mxu0 0.0
    %314 = vmatprep.subr.mxu0 0.0
    %315 = vmatpush2.xpose.msra.mxu0 0.0
    %316 = vmatprep.subr.mxu0 0.0
    %317 = vmatpush2.xpose.msra.mxu0 0.0
    %318 = vmatprep.subr.mxu0 0.0
    %319 = vmatpush2.xpose.msra.mxu0 0.0
    %320 = vmatprep.subr.mxu0 0.0
    %321 = vmatpush2.xpose.msra.mxu0 0.0
    %322 = vmatprep.subr.mxu0 0.0
    %323 = vmatpush2.xpose.msra.mxu0 0.0
    %324 = vmatprep.subr.mxu0 0.0
    %325 = vmatpush2.xpose.msra.mxu0 0.0
    %326 = vmatprep.subr.mxu0 0.0
    %327 = vmatpush2.xpose.msra.mxu0 0.0
    %328 = vmatprep.mubr.f32.mxu0 0.0
    %329 = vmatmul.mubr.f32.gmra.mxu0 %v261
    %v330 = vpop.f32.mrf.mxu0
    %v331 = vadd.f32 %v263, %v330
    %v332 = vpop.f32.mrf.mxu0
    %333 = vdwg.mxu0
    %334 = vst [vmem:[#allocation3] sm:$0x1] %v331
    // Predicated region
    $region22: #{tpu_custom_call.1} parent=1 // pred_check
      _
    $region23: #{tpu_custom_call.1} parent=1 // pred_check_branch
      %336 = sbr.rel (0) target = $region25
    $region24: #{tpu_custom_call.1} parent=1 // pred_region
      %s338 = ssub.s32 16, 16
      %339 = vsyncadd [#allocation4], %s338
      %s341 = sshll.u32 [#allocation3], 4
      %s342 = int_to_ptr.vmem [resolvable:$true] %s341
      %344 = dma.vmem_to_hbm [thread:$0]  %s342, 16, %s5, [#allocation4]
    $region25: #{tpu_custom_call.1} parent=1 // pred_fallthru
      _
    // Predicated region
    $region26: #{tpu_custom_call.1} parent=1 // pred_check
      _
    $region27: #{tpu_custom_call.1} parent=1 // pred_check_branch
      %346 = sbr.rel (0) target = $region29
    $region28: #{tpu_custom_call.1} parent=1 // pred_region
      %347 = dma.done [#allocation4], 16
    $region29: #{tpu_custom_call.1} parent=1 // pred_fallthru
      _
    %348 = vsyncpa [#allocation4], 1

</llo_original>
